<compile_context>
chip_gen: v7x
topology: tpu7x:2x2x1
jax: 0.10.0
libtpu: 0.0.40
codegen_flags: <defaults>
</compile_context>

<pallas_src>
import jax
import jax.numpy as jnp
from jax.experimental import pallas as pl
from jax.experimental.pallas import tpu as pltpu


# ---------------------------------------------------------------------------
# Kernels
# ---------------------------------------------------------------------------

def film_kernel_merged(cond_ref, hid_ref, w0_ref, b0_ref, w1_ref, b1_ref, out_ref):
    """Dense_1 as one (tm, 4H) @ (4H, 2H) matmul; used when H % 128 == 0."""
    H = out_ref.shape[-1]

    # Dense_0: bf16 MXU operands, f32 accumulate + f32 bias, SiLU in f32 (EUP).
    cond = cond_ref[...].astype(jnp.bfloat16)
    h = jnp.dot(cond, w0_ref[...], preferred_element_type=jnp.float32) + b0_ref[...]
    h = h * jax.nn.sigmoid(h)

    # Dense_1: single wide matmul fills the 256-lane MXU on v6e/v7x.
    # b1_ref already has the FiLM "+1" folded into its first H columns.
    h2 = jnp.dot(h.astype(jnp.bfloat16), w1_ref[...],
                 preferred_element_type=jnp.float32) + b1_ref[...]

    # Slice at column H is exactly on a 128-lane vreg boundary here.
    hid = hid_ref[...].astype(jnp.float32)
    out_ref[...] = (hid * h2[:, :H] + h2[:, H:]).astype(out_ref.dtype)


def film_kernel_split(cond_ref, hid_ref, w0_ref, b0_ref,
                      w1s_ref, w1h_ref, b1s_ref, b1h_ref, out_ref):
    """Dense_1 split into lane-aligned scale/shift halves; used when H % 128 != 0."""
    cond = cond_ref[...].astype(jnp.bfloat16)
    h = jnp.dot(cond, w0_ref[...], preferred_element_type=jnp.float32) + b0_ref[...]
    h = h * jax.nn.sigmoid(h)

    hb = h.astype(jnp.bfloat16)
    # b1s already has the FiLM "+1" folded in.
    scale = jnp.dot(hb, w1s_ref[...], preferred_element_type=jnp.float32) + b1s_ref[...]
    shift = jnp.dot(hb, w1h_ref[...], preferred_element_type=jnp.float32) + b1h_ref[...]

    hid = hid_ref[...].astype(jnp.float32)
    out_ref[...] = (hid * scale + shift).astype(out_ref.dtype)


# ---------------------------------------------------------------------------
# One-time parameter prep (call at load time, NOT per forward)
# ---------------------------------------------------------------------------

def prepare_film_params(w0, b0, w1, b1):
    """w0: (4H, dim), b0: (4H,), w1: (2H, 4H), b1: (2H,)  -- PyTorch nn.Linear layout.

    Returns kernel-ready tensors: transposed bf16 weights, f32 2-D biases, the
    FiLM '+1' folded into the scale-half bias, and Dense_1 either kept merged
    (H % 128 == 0 -> lane-aligned slice in-kernel) or pre-split into halves.
    """
    two_h = w1.shape[0]
    H = two_h // 2

    w0_t = jnp.transpose(jnp.asarray(w0)).astype(jnp.bfloat16)        # (dim, 4H) bf16
    b0_2d = jnp.asarray(b0).astype(jnp.float32).reshape(1, -1)        # (1, 4H)  f32

    w1_t = jnp.transpose(jnp.asarray(w1)).astype(jnp.bfloat16)        # (4H, 2H) bf16
    b1_f = jnp.asarray(b1).astype(jnp.float32)
    b1_folded = b1_f.at[:H].add(1.0).reshape(1, -1)                   # (1, 2H), +1 in scale half

    if H % 128 == 0:
        return dict(kind="merged", H=H, w0=w0_t, b0=b0_2d, w1=w1_t, b1=b1_folded)
    return dict(kind="split", H=H, w0=w0_t, b0=b0_2d,
                w1s=w1_t[:, :H], w1h=w1_t[:, H:],
                b1s=b1_folded[:, :H], b1h=b1_folded[:, H:])


# ---------------------------------------------------------------------------
# Forward wrapper
# ---------------------------------------------------------------------------

def _choose_block_rows(B, block_rows):
    """Batch tile size: big (amortize per-step overhead), sublane-aligned, and
    guaranteeing >= 2 grid steps when B is large enough (v7x megacore + pipeline)."""
    tm = min(block_rows, B)
    if tm < B:
        tm = max(8, (tm // 8) * 8)                    # sublane multiple for non-final tiles
    if B >= 16 and tm > (B + 1) // 2:
        tm = min(B, (((B + 1) // 2 + 7) // 8) * 8)    # ceil(B/2) rounded up to 8
    return tm


def film_forward(conditions, hiddens, params, *, block_rows=512):
    """conditions: (B, dim), hiddens: (B, H). params from prepare_film_params."""
    B, dim = conditions.shape
    H = hiddens.shape[-1]
    w0_t, b0_2d = params["w0"], params["b0"]
    H4 = w0_t.shape[-1]

    tm = _choose_block_rows(B, block_rows)
    grid = (pl.cdiv(B, tm),)                          # ragged last block is fine (row-wise op)

    def row_spec(cols):
        return pl.BlockSpec((tm, cols), lambda i: (i, 0))

    def const_spec(a):
        return pl.BlockSpec(a.shape, lambda i: (0, 0))  # resident across all grid steps

    cost = pl.CostEstimate(
        flops=2 * B * dim * H4 + 2 * B * H4 * (2 * H) + 4 * B * H,
        transcendentals=B * H4,
        bytes_accessed=(4 * B * (dim + 2 * H)         # f32 cond / hiddens / out streams
                        + 2 * (dim * H4 + 2 * H4 * H)  # bf16 weights (one-time)
                        + 4 * (H4 + 2 * H)),           # f32 biases
    )

    out_shape = jax.ShapeDtypeStruct(hiddens.shape, hiddens.dtype)
    compiler_params = pltpu.CompilerParams(dimension_semantics=("parallel",))
    common_specs = [row_spec(dim), row_spec(H), const_spec(w0_t), const_spec(b0_2d)]

    if params["kind"] == "merged":
        return pl.pallas_call(
            film_kernel_merged,
            out_shape=out_shape,
            grid=grid,
            in_specs=common_specs + [const_spec(params["w1"]), const_spec(params["b1"])],
            out_specs=row_spec(H),
            compiler_params=compiler_params,
            cost_estimate=cost,
        )(conditions, hiddens, w0_t, b0_2d, params["w1"], params["b1"])

    return pl.pallas_call(
        film_kernel_split,
        out_shape=out_shape,
        grid=grid,
        in_specs=common_specs + [const_spec(params["w1s"]), const_spec(params["w1h"]),
                                 const_spec(params["b1s"]), const_spec(params["b1h"])],
        out_specs=row_spec(H),
        compiler_params=compiler_params,
        cost_estimate=cost,
    )(conditions, hiddens, w0_t, b0_2d,
      params["w1s"], params["w1h"], params["b1s"], params["b1h"])


# ---------------------------------------------------------------------------
# Pure-JAX reference (f32 everywhere)
# ---------------------------------------------------------------------------

def film_reference(conditions, hiddens, w0, b0, w1, b1):
    h = conditions @ w0.T + b0
    h = h * jax.nn.sigmoid(h)
    h = h @ w1.T + b1
    H = hiddens.shape[-1]
    scale, shift = h[:, :H], h[:, H:]
    return hiddens * (scale + 1.0) + shift


if __name__ == "__main__":
    key = jax.random.PRNGKey(0)

    def run_case(B, dim, hidden_dim, k):
        kc, kh, kw0, kw1, kb0, kb1 = jax.random.split(k, 6)
        conditions = jax.random.normal(kc, (B, dim), jnp.float32)
        hiddens = jax.random.normal(kh, (B, hidden_dim), jnp.float32)

        # default_init() in the reference is variance-scaling (fan_avg, uniform);
        # small nonzero biases here to exercise the bias / "+1"-fold paths.
        lim0 = (6.0 / (dim + 4 * hidden_dim)) ** 0.5
        lim1 = (6.0 / (4 * hidden_dim + 2 * hidden_dim)) ** 0.5
        w0 = jax.random.uniform(kw0, (4 * hidden_dim, dim), jnp.float32, -lim0, lim0)
        b0 = jax.random.uniform(kb0, (4 * hidden_dim,), jnp.float32, -0.1, 0.1)
        w1 = jax.random.uniform(kw1, (2 * hidden_dim, 4 * hidden_dim), jnp.float32, -lim1, lim1)
        b1 = jax.random.uniform(kb1, (2 * hidden_dim,), jnp.float32, -0.1, 0.1)

        params = prepare_film_params(w0, b0, w1, b1)   # one-time: transpose/bf16/split/fold +1
        out = jax.block_until_ready(film_forward(conditions, hiddens, params))

        ref = film_reference(conditions, hiddens, w0, b0, w1, b1)
        assert out.shape == hiddens.shape and out.dtype == hiddens.dtype
        # bf16 MXU operands (f32 accumulate) -> loosened tolerance vs f32 reference.
        assert jnp.allclose(out, ref, atol=3e-2, rtol=3e-2), \
            f"mismatch vs reference (B={B}, hidden_dim={hidden_dim})"

    k1, k2 = jax.random.split(key)
    # Merged-Dense_1 path (H % 128 == 0), batch tiled into 2 grid steps.
    run_case(B=16, dim=8, hidden_dim=128, k=k1)
    # Split-Dense_1 path (H % 128 != 0), single grid step.
    run_case(B=8, dim=8, hidden_dim=32, k=k2)

    print("KERNEL_OK")
</pallas_src>

<mosaic_0001>
module attributes {stable_mosaic.version = 11 : i64} {
  func.func @film_kernel_merged(%arg0: i32, %arg1: memref<8x8xf32, #tpu.memory_space<vmem>>, %arg2: memref<8x128xf32, #tpu.memory_space<vmem>>, %arg3: memref<8x512xbf16, #tpu.memory_space<vmem>>, %arg4: memref<1x512xf32, #tpu.memory_space<vmem>>, %arg5: memref<512x256xbf16, #tpu.memory_space<vmem>>, %arg6: memref<1x256xf32, #tpu.memory_space<vmem>>, %arg7: memref<8x128xf32, #tpu.memory_space<vmem>>) attributes {dimension_semantics = [#tpu.dimension_semantics<parallel>], iteration_bounds = array<i64: 2>, scalar_prefetch = 0 : i64, scratch_operands = 0 : i64, tpu.core_type = #tpu.core_type<tc>, window_params = [{transform_indices = @transform_0, window_bounds = array<i64: 8, 8>}, {transform_indices = @transform_1, window_bounds = array<i64: 8, 128>}, {pipeline_mode = #tpu.pipeline_mode<synchronous>, transform_indices = @transform_2, window_bounds = array<i64: 8, 512>}, {pipeline_mode = #tpu.pipeline_mode<synchronous>, transform_indices = @transform_3, window_bounds = array<i64: 1, 512>}, {pipeline_mode = #tpu.pipeline_mode<synchronous>, transform_indices = @transform_4, window_bounds = array<i64: 512, 256>}, {pipeline_mode = #tpu.pipeline_mode<synchronous>, transform_indices = @transform_5, window_bounds = array<i64: 1, 256>}, {transform_indices = @transform_6, window_bounds = array<i64: 8, 128>}]} {
    %c0 = arith.constant 0 : index
    %c0_0 = arith.constant 0 : index
    %0 = vector.load %arg1[%c0, %c0_0] : memref<8x8xf32, #tpu.memory_space<vmem>>, vector<8x8xf32>
    %1 = arith.truncf %0 : vector<8x8xf32> to vector<8x8xbf16>
    %c0_1 = arith.constant 0 : index
    %c0_2 = arith.constant 0 : index
    %2 = vector.load %arg3[%c0_1, %c0_2] : memref<8x512xbf16, #tpu.memory_space<vmem>>, vector<8x512xbf16>
    %cst = arith.constant dense<0.000000e+00> : vector<8x512xf32>
    %3 = tpu.matmul %1, %2, %cst {dimension_numbers = #tpu.dot_dimension_numbers<[1], [0], [0], [1], [0, 0, 1, 1], [], []>} : vector<8x8xbf16>, vector<8x512xbf16>, vector<8x512xf32> -> vector<8x512xf32>
    %c0_3 = arith.constant 0 : index
    %c0_4 = arith.constant 0 : index
    %4 = vector.load %arg4[%c0_3, %c0_4] : memref<1x512xf32, #tpu.memory_space<vmem>>, vector<1x512xf32>
    %5 = vector.broadcast %4 : vector<1x512xf32> to vector<8x512xf32>
    %6 = arith.addf %3, %5 : vector<8x512xf32>
    %7 = arith.negf %6 : vector<8x512xf32>
    %8 = math.exp %7 : vector<8x512xf32>
    %cst_5 = arith.constant 1.000000e+00 : f32
    %9 = vector.broadcast %cst_5 : f32 to vector<8x512xf32>
    %10 = arith.addf %9, %8 : vector<8x512xf32>
    %11 = arith.divf %9, %10 : vector<8x512xf32>
    %12 = arith.mulf %6, %11 : vector<8x512xf32>
    %13 = arith.truncf %12 : vector<8x512xf32> to vector<8x512xbf16>
    %c0_6 = arith.constant 0 : index
    %c0_7 = arith.constant 0 : index
    %14 = vector.load %arg5[%c0_6, %c0_7] : memref<512x256xbf16, #tpu.memory_space<vmem>>, vector<512x256xbf16>
    %cst_8 = arith.constant dense<0.000000e+00> : vector<8x256xf32>
    %15 = tpu.matmul %13, %14, %cst_8 {dimension_numbers = #tpu.dot_dimension_numbers<[1], [0], [0], [1], [0, 0, 1, 1], [], []>} : vector<8x512xbf16>, vector<512x256xbf16>, vector<8x256xf32> -> vector<8x256xf32>
    %c0_9 = arith.constant 0 : index
    %c0_10 = arith.constant 0 : index
    %16 = vector.load %arg6[%c0_9, %c0_10] : memref<1x256xf32, #tpu.memory_space<vmem>>, vector<1x256xf32>
    %17 = vector.broadcast %16 : vector<1x256xf32> to vector<8x256xf32>
    %18 = arith.addf %15, %17 : vector<8x256xf32>
    %c0_11 = arith.constant 0 : index
    %c0_12 = arith.constant 0 : index
    %19 = vector.load %arg2[%c0_11, %c0_12] : memref<8x128xf32, #tpu.memory_space<vmem>>, vector<8x128xf32>
    %20 = vector.extract_strided_slice %18 {offsets = [0, 0], sizes = [8, 128], strides = [1, 1]} : vector<8x256xf32> to vector<8x128xf32>
    %21 = arith.mulf %19, %20 : vector<8x128xf32>
    %22 = vector.extract_strided_slice %18 {offsets = [0, 128], sizes = [8, 128], strides = [1, 1]} : vector<8x256xf32> to vector<8x128xf32>
    %23 = arith.addf %21, %22 : vector<8x128xf32>
    %c0_13 = arith.constant 0 : index
    %c0_14 = arith.constant 0 : index
    %24 = vector.load %arg7[%c0_13, %c0_14] : memref<8x128xf32, #tpu.memory_space<vmem>>, vector<8x128xf32>
    tpu.vector_store %arg7[%c0_13, %c0_14], %23 {strides = array<i32>} : memref<8x128xf32, #tpu.memory_space<vmem>>, vector<8x128xf32>,
    return
  }
  func.func @transform_0(%arg0: i32) -> (i32, i32) {
    %c0_i32 = arith.constant 0 : i32
    %c0_i32_0 = arith.constant 0 : i32
    return %arg0, %c0_i32 : i32, i32
  }
  func.func @transform_1(%arg0: i32) -> (i32, i32) {
    %c0_i32 = arith.constant 0 : i32
    %c0_i32_0 = arith.constant 0 : i32
    return %arg0, %c0_i32 : i32, i32
  }
  func.func @transform_2(%arg0: i32) -> (i32, i32) {
    %c0_i32 = arith.constant 0 : i32
    %c0_i32_0 = arith.constant 0 : i32
    %c0_i32_1 = arith.constant 0 : i32
    return %c0_i32, %c0_i32_0 : i32, i32
  }
  func.func @transform_3(%arg0: i32) -> (i32, i32) {
    %c0_i32 = arith.constant 0 : i32
    %c0_i32_0 = arith.constant 0 : i32
    %c0_i32_1 = arith.constant 0 : i32
    return %c0_i32, %c0_i32_0 : i32, i32
  }
  func.func @transform_4(%arg0: i32) -> (i32, i32) {
    %c0_i32 = arith.constant 0 : i32
    %c0_i32_0 = arith.constant 0 : i32
    %c0_i32_1 = arith.constant 0 : i32
    return %c0_i32, %c0_i32_0 : i32, i32
  }
  func.func @transform_5(%arg0: i32) -> (i32, i32) {
    %c0_i32 = arith.constant 0 : i32
    %c0_i32_0 = arith.constant 0 : i32
    %c0_i32_1 = arith.constant 0 : i32
    return %c0_i32, %c0_i32_0 : i32, i32
  }
  func.func @transform_6(%arg0: i32) -> (i32, i32) {
    %c0_i32 = arith.constant 0 : i32
    %c0_i32_0 = arith.constant 0 : i32
    return %arg0, %c0_i32 : i32, i32
  }
}

</mosaic_0001>

<llo_original>
// kernel: tpu_custom_call.1
$region0: #{tpu_custom_call.1}
  #allocation0 [shape = 'u32[]', space=smem, size = 0x4, offset = 0x4, fixed_abs, tag = 'smem constant byte address 0x4 - core index']
  #allocation1 [shape = 'u32[144,128]{1,0:T(1,128)}', space=vmem, size = 0x12000, scoped, tag = 'internal scratch']
  %s0 = inlined_call_operand.vmem [shape: f32[16,8], index: 0, kind: input, shape index: {}]
  %s1 = inlined_call_operand.vmem [shape: f32[16,128], index: 1, kind: input, shape index: {}]
  %s2 = inlined_call_operand.hbm [shape: bf16[8,512], index: 2, kind: input, shape index: {}]
  %s3 = inlined_call_operand.vmem [shape: f32[1,512], index: 3, kind: input, shape index: {}]
  %s4 = inlined_call_operand.hbm [shape: bf16[512,256], index: 4, kind: input, shape index: {}]
  %s5 = inlined_call_operand.vmem [shape: f32[1,256], index: 5, kind: input, shape index: {}]
  %s6 = inlined_call_operand.hbm [shape: f32[16,128], index: 6, kind: output, shape index: {}]
  %s7 = sld [smem:[#allocation0]]
  $region65: #{tpu_custom_call.1} parent=0
    _
  %s9 = ssub.s32 1, %s7
  %s10 = scalar_select 0, %s9, %s7
  $region1: #{tpu_custom_call.1} parent=0
    #allocation2 [shape = 'u8[8192]{0}', space=vmem, size = 0x2000, scoped, tag = 'input window, operand 2, single buffered']
    #allocation3 [shape = 's32[2]{0}', space=sflag, size = 0x8, scoped, tag = 'scoped memory for tpu_custom_call.1']
    #allocation4 [shape = 's32[2]{0}', space=sflag, size = 0x8, scoped, tag = 'scoped memory for tpu_custom_call.1']
    #allocation5 [shape = 'u8[262144]{0}', space=vmem, size = 0x40000, scoped, tag = 'input window, operand 4, single buffered']
    #allocation6 [shape = 's32[1]{0}', space=sflag, size = 0x4, scoped, tag = 'scoped memory for tpu_custom_call.1']
    #allocation7 [shape = 'u8[8192]{0}', space=vmem, size = 0x2000, scoped, tag = 'output window, operand 0']
    %11 = vsyncpa [#allocation3], 0
    %12 = vsyncpa [#allocation6], 0
    %13 = vsyncpa [#allocation4], 0
    %s14 = scalar_lea.sflag [#allocation4], 1
    %15 = vsyncpa %s14, 0
    loop: start=0, step=1, limit=4
    $region2: #{tpu_custom_call.1} parent=1 // loop_pre_header
      _
    $region3: #{tpu_custom_call.1} parent=1 // loop_header
      %s17 = sphi 0, %s21
      %p18 = scmp.ge.s32.totalorder %s17, 4
      %s27 = sphi 0, %s29
      %s30 = sphi 0, %s27
      %s31 = sphi 0, %s30
      %s47 = sphi 0, %s31
      %s53 = sphi 0, %s55
      %s56 = sphi 0, %s53
      %s57 = sphi 0, %s56
      %s73 = sphi 0, %s57
      %s77 = sphi 0, %s77
      %s79 = sphi 0, %s77
      %s80 = sphi 0, %s79
      %s94 = sphi 0, %s80
      %s98 = sphi 0, %s98
      %s100 = sphi 0, %s98
      %s101 = sphi 0, %s100
      %s115 = sphi 0, %s101
      %s119 = sphi 0, %s119
      %s121 = sphi 0, %s119
      %s122 = sphi 0, %s121
      %s136 = sphi 0, %s122
      %s140 = sphi 0, %s140
      %s142 = sphi 0, %s140
      %s143 = sphi 0, %s142
      %s157 = sphi 0, %s143
      %s163 = sphi 0, %s165
      %s166 = sphi 0, %s163
      %s167 = sphi 0, %s166
      %s183 = sphi 0, %s167
    $region4: #{tpu_custom_call.1} parent=1 // loop_header_branch
      %20 = sbr.rel (%p18) target = $region8
    $region5: #{tpu_custom_call.1} parent=1 // loop_body
      %s22 = ssub.s32 %s17, 1
      %s23 = ssub.s32 %s17, 2
      %s24 = sadd.s32 %s17, 1
      %s25 = ssub.s32 %s17, %s24
      %p26 = scmp.eq.s32.totalorder %s25, 0
      %s28 = sadd.s32 %s27, 1
      %s29 = scalar_select %p26, %s27, %s28
      %p32 = pneg %p26
      %p33 = scmp.eq.s32.totalorder %s17, 1
      %p34 = por %p32, %p33
      %p35 = scmp.ne.s32.totalorder %s27, %s30
      %p36 = scmp.eq.s32.totalorder %s17, 0
      %p37 = por %p35, %p36
      %p38 = scmp.ne.s32.totalorder %s27, %s30
      %p39 = scmp.eq.s32.totalorder %s22, 1
      %p40 = por %p38, %p39
      %p41 = scmp.ne.s32.totalorder %s30, %s31
      %p42 = scmp.eq.s32.totalorder %s22, 0
      %p43 = por %p41, %p42
      %p44 = scmp.ne.s32.totalorder %s30, %s31
      %p45 = scmp.eq.s32.totalorder %s23, 1
      %p46 = por %p44, %p45
      %p48 = scmp.ne.s32.totalorder %s31, %s47
      %p49 = scmp.eq.s32.totalorder %s23, 0
      %p50 = por %p48, %p49
      %s51 = ssub.s32 %s17, %s24
      %p52 = scmp.eq.s32.totalorder %s51, 0
      %s54 = sadd.s32 %s53, 1
      %s55 = scalar_select %p52, %s53, %s54
      %p58 = pneg %p52
      %p59 = scmp.eq.s32.totalorder %s17, 1
      %p60 = por %p58, %p59
      %p61 = scmp.ne.s32.totalorder %s53, %s56
      %p62 = scmp.eq.s32.totalorder %s17, 0
      %p63 = por %p61, %p62
      %p64 = scmp.ne.s32.totalorder %s53, %s56
      %p65 = scmp.eq.s32.totalorder %s22, 1
      %p66 = por %p64, %p65
      %p67 = scmp.ne.s32.totalorder %s56, %s57
      %p68 = scmp.eq.s32.totalorder %s22, 0
      %p69 = por %p67, %p68
      %p70 = scmp.ne.s32.totalorder %s56, %s57
      %p71 = scmp.eq.s32.totalorder %s23, 1
      %p72 = por %p70, %p71
      %p74 = scmp.ne.s32.totalorder %s57, %s73
      %p75 = scmp.eq.s32.totalorder %s23, 0
      %p76 = por %p74, %p75
      %s78 = sadd.s32 %s77, 1
      %p81 = scmp.eq.s32.totalorder %s17, 1
      %p82 = scmp.ne.s32.totalorder %s77, %s79
      %p83 = scmp.eq.s32.totalorder %s17, 0
      %p84 = por %p82, %p83
      %p85 = scmp.ne.s32.totalorder %s77, %s79
      %p86 = scmp.eq.s32.totalorder %s22, 1
      %p87 = por %p85, %p86
      %p88 = scmp.ne.s32.totalorder %s79, %s80
      %p89 = scmp.eq.s32.totalorder %s22, 0
      %p90 = por %p88, %p89
      %p91 = scmp.ne.s32.totalorder %s79, %s80
      %p92 = scmp.eq.s32.totalorder %s23, 1
      %p93 = por %p91, %p92
      %p95 = scmp.ne.s32.totalorder %s80, %s94
      %p96 = scmp.eq.s32.totalorder %s23, 0
      %p97 = por %p95, %p96
      %s99 = sadd.s32 %s98, 1
      %p102 = scmp.eq.s32.totalorder %s17, 1
      %p103 = scmp.ne.s32.totalorder %s98, %s100
      %p104 = scmp.eq.s32.totalorder %s17, 0
      %p105 = por %p103, %p104
      %p106 = scmp.ne.s32.totalorder %s98, %s100
      %p107 = scmp.eq.s32.totalorder %s22, 1
      %p108 = por %p106, %p107
      %p109 = scmp.ne.s32.totalorder %s100, %s101
      %p110 = scmp.eq.s32.totalorder %s22, 0
      %p111 = por %p109, %p110
      %p112 = scmp.ne.s32.totalorder %s100, %s101
      %p113 = scmp.eq.s32.totalorder %s23, 1
      %p114 = por %p112, %p113
      %p116 = scmp.ne.s32.totalorder %s101, %s115
      %p117 = scmp.eq.s32.totalorder %s23, 0
      %p118 = por %p116, %p117
      %s120 = sadd.s32 %s119, 1
      %p123 = scmp.eq.s32.totalorder %s17, 1
      %p124 = scmp.ne.s32.totalorder %s119, %s121
      %p125 = scmp.eq.s32.totalorder %s17, 0
      %p126 = por %p124, %p125
      %p127 = scmp.ne.s32.totalorder %s119, %s121
      %p128 = scmp.eq.s32.totalorder %s22, 1
      %p129 = por %p127, %p128
      %p130 = scmp.ne.s32.totalorder %s121, %s122
      %p131 = scmp.eq.s32.totalorder %s22, 0
      %p132 = por %p130, %p131
      %p133 = scmp.ne.s32.totalorder %s121, %s122
      %p134 = scmp.eq.s32.totalorder %s23, 1
      %p135 = por %p133, %p134
      %p137 = scmp.ne.s32.totalorder %s122, %s136
      %p138 = scmp.eq.s32.totalorder %s23, 0
      %p139 = por %p137, %p138
      %s141 = sadd.s32 %s140, 1
      %p144 = scmp.eq.s32.totalorder %s17, 1
      %p145 = scmp.ne.s32.totalorder %s140, %s142
      %p146 = scmp.eq.s32.totalorder %s17, 0
      %p147 = por %p145, %p146
      %p148 = scmp.ne.s32.totalorder %s140, %s142
      %p149 = scmp.eq.s32.totalorder %s22, 1
      %p150 = por %p148, %p149
      %p151 = scmp.ne.s32.totalorder %s142, %s143
      %p152 = scmp.eq.s32.totalorder %s22, 0
      %p153 = por %p151, %p152
      %p154 = scmp.ne.s32.totalorder %s142, %s143
      %p155 = scmp.eq.s32.totalorder %s23, 1
      %p156 = por %p154, %p155
      %p158 = scmp.ne.s32.totalorder %s143, %s157
      %p159 = scmp.eq.s32.totalorder %s23, 0
      %p160 = por %p158, %p159
      %s161 = ssub.s32 %s17, %s24
      %p162 = scmp.eq.s32.totalorder %s161, 0
      %s164 = sadd.s32 %s163, 1
      %s165 = scalar_select %p162, %s163, %s164
      %p168 = pneg %p162
      %p169 = scmp.eq.s32.totalorder %s17, 1
      %p170 = por %p168, %p169
      %p171 = scmp.ne.s32.totalorder %s163, %s166
      %p172 = scmp.eq.s32.totalorder %s17, 0
      %p173 = por %p171, %p172
      %p174 = scmp.ne.s32.totalorder %s163, %s166
      %p175 = scmp.eq.s32.totalorder %s22, 1
      %p176 = por %p174, %p175
      %p177 = scmp.ne.s32.totalorder %s166, %s167
      %p178 = scmp.eq.s32.totalorder %s22, 0
      %p179 = por %p177, %p178
      %p180 = scmp.ne.s32.totalorder %s166, %s167
      %p181 = scmp.eq.s32.totalorder %s23, 1
      %p182 = por %p180, %p181
      %p184 = scmp.ne.s32.totalorder %s167, %s183
      %p185 = scmp.eq.s32.totalorder %s23, 0
      %p186 = por %p184, %p185
      %p187 = scmp.le.s32.totalorder 1, %s17
      %p188 = scmp.lt.s32.totalorder %s17, 3
      %p189 = pnand %p187, %p188
      %p190 = pneg %p189
      // Predicated region
      $region9: #{tpu_custom_call.1} parent=5 // pred_check
        _
      $region10: #{tpu_custom_call.1} parent=5 // pred_check_branch
        %192 = sbr.rel (%p189) target = $region12
      $region11: #{tpu_custom_call.1} parent=5 // pred_region
        %s193 = ssub.s32 %s17, 1
        // Predicated region
        $region13: #{tpu_custom_call.1} parent=11 // pred_check
          %p194 = pneg %p90
        $region14: #{tpu_custom_call.1} parent=11 // pred_check_branch
          %196 = sbr.rel (%p194) target = $region16
        $region15: #{tpu_custom_call.1} parent=11 // pred_region
          %s198 = ssub.s32 256, 256
          %199 = vsyncadd [#allocation3], %s198
          %s201 = sshll.u32 [#allocation2], 4
          %s202 = int_to_ptr.vmem [resolvable:$true] %s201
          %204 = dma.hbm_to_vmem [thread:$0]  %s2, 256, %s202, [#allocation3]
        $region16: #{tpu_custom_call.1} parent=11 // pred_fallthru
          _
        // Predicated region
        $region17: #{tpu_custom_call.1} parent=11 // pred_check
          %p205 = pneg %p111
        $region18: #{tpu_custom_call.1} parent=11 // pred_check_branch
          %207 = sbr.rel (%p205) target = $region20
        $region19: #{tpu_custom_call.1} parent=11 // pred_region
          _
        $region20: #{tpu_custom_call.1} parent=11 // pred_fallthru
          _
        // Predicated region
        $region21: #{tpu_custom_call.1} parent=11 // pred_check
          %p208 = pneg %p132
        $region22: #{tpu_custom_call.1} parent=11 // pred_check_branch
          %210 = sbr.rel (%p208) target = $region24
        $region23: #{tpu_custom_call.1} parent=11 // pred_region
          %s212 = ssub.s32 8192, 8192
          %213 = vsyncadd [#allocation6], %s212
          %s214 = sshll.u32 [#allocation5], 4
          %s215 = int_to_ptr.vmem [resolvable:$true] %s214
          %220 = dma.hbm_to_vmem [thread:$0]  %s4, 8192, %s215, [#allocation6], 128, 128, 8
        $region24: #{tpu_custom_call.1} parent=11 // pred_fallthru
          _
        // Predicated region
        $region25: #{tpu_custom_call.1} parent=11 // pred_check
          %p221 = pneg %p153
        $region26: #{tpu_custom_call.1} parent=11 // pred_check_branch
          %223 = sbr.rel (%p221) target = $region28
        $region27: #{tpu_custom_call.1} parent=11 // pred_region
          _
        $region28: #{tpu_custom_call.1} parent=11 // pred_fallthru
          _
      $region12: #{tpu_custom_call.1} parent=5 // pred_fallthru
        _
      %p224 = scmp.lt.s32.totalorder %s17, 2
      // Predicated region
      $region29: #{tpu_custom_call.1} parent=5 // pred_check
        %p225 = pneg %p224
      $region30: #{tpu_custom_call.1} parent=5 // pred_check_branch
        %227 = sbr.rel (%p225) target = $region32
      $region31: #{tpu_custom_call.1} parent=5 // pred_region
        // Predicated region
        $region33: #{tpu_custom_call.1} parent=31 // pred_check
          %p228 = pneg %p37
        $region34: #{tpu_custom_call.1} parent=31 // pred_check_branch
          %230 = sbr.rel (%p228) target = $region36
        $region35: #{tpu_custom_call.1} parent=31 // pred_region
          %p231 = scmp.lt.s32.totalorder %s17, 1
          %s232 = scalar_select %p231, %s17, 1
          %s233 = smul.addr %s232, 8
          %s234 = scalar_lea.vmem %s0, %s233
        $region36: #{tpu_custom_call.1} parent=31 // pred_fallthru
          _
        // Predicated region
        $region37: #{tpu_custom_call.1} parent=31 // pred_check
          %p235 = pneg %p63
        $region38: #{tpu_custom_call.1} parent=31 // pred_check_branch
          %237 = sbr.rel (%p235) target = $region40
        $region39: #{tpu_custom_call.1} parent=31 // pred_region
          %p238 = scmp.lt.s32.totalorder %s17, 1
          %s239 = scalar_select %p238, %s17, 1
          %s240 = smul.addr %s239, 8
          %s241 = scalar_lea.vmem %s1, %s240
        $region40: #{tpu_custom_call.1} parent=31 // pred_fallthru
          _
      $region32: #{tpu_custom_call.1} parent=5 // pred_fallthru
        _
      %p242 = scmp.le.s32.totalorder 1, %s17
      %p243 = scmp.lt.s32.totalorder %s17, 3
      %p244 = pnand %p242, %p243
      %p245 = pneg %p244
      // Predicated region
      $region41: #{tpu_custom_call.1} parent=5 // pred_check
        _
      $region42: #{tpu_custom_call.1} parent=5 // pred_check_branch
        %247 = sbr.rel (%p244) target = $region44
      $region43: #{tpu_custom_call.1} parent=5 // pred_region
        %s248 = ssub.s32 %s17, 1
        // Predicated region
        $region45: #{tpu_custom_call.1} parent=43 // pred_check
          %p249 = pneg %p90
        $region46: #{tpu_custom_call.1} parent=43 // pred_check_branch
          %251 = sbr.rel (%p249) target = $region48
        $region47: #{tpu_custom_call.1} parent=43 // pred_region
          %252 = dma.done [#allocation3], 256
        $region48: #{tpu_custom_call.1} parent=43 // pred_fallthru
          _
        // Predicated region
        $region49: #{tpu_custom_call.1} parent=43 // pred_check
          %p253 = pneg %p132
        $region50: #{tpu_custom_call.1} parent=43 // pred_check_branch
          %255 = sbr.rel (%p253) target = $region52
        $region51: #{tpu_custom_call.1} parent=43 // pred_region
          %256 = dma.done [#allocation6], 8192
        $region52: #{tpu_custom_call.1} parent=43 // pred_fallthru
          _
        %p257 = scmp.lt.s32.totalorder %s22, 1
        %s258 = scalar_select %p257, %s22, 1
        %s259 = smul.addr %s258, 8
        %s260 = scalar_lea.vmem %s0, %s259
        %p261 = pneg %p43
        %p262 = pneg %p40
        %p263 = scmp.lt.s32.totalorder %s22, 1
        %s264 = scalar_select %p263, %s22, 1
        %s265 = smul.addr %s264, 8
        %s266 = scalar_lea.vmem %s1, %s265
        %p267 = pneg %p69
        %p268 = pneg %p66
        %p269 = pneg %p90
        %p270 = pneg %p87
        %p271 = pneg %p111
        %p272 = pneg %p108
        %p273 = pneg %p132
        %p274 = pneg %p129
        %p275 = pneg %p153
        %p276 = pneg %p150
        %p277 = pneg %p179
        %p278 = pneg %p176
        %s279 = sand.u32 %s166, 1
        %s280 = scalar_lea.sflag [#allocation4], %s279
        %s281 = sand.u32 %s166, 1
        %s282 = smul.addr %s281, 8
        %s283 = scalar_lea.vmem [#allocation7], %s282
        %p284 = scmp.lt.s32.totalorder %s22, 1
        %s285 = scalar_select %p284, %s22, 1
        %s286 = smul.addr %s285, 8
        %s287 = scalar_lea.vmem %s0, %s286
        %p288 = scmp.lt.s32.totalorder %s22, 1
        %s289 = scalar_select %p288, %s22, 1
        %s290 = smul.addr %s289, 8
        %s291 = scalar_lea.vmem %s1, %s290
        %v293 = vld [vmem:[%s287] sm:$0xff]
        %v294 = vpack.c.bf16 %v293, %v293
        %v295 = vld [vmem:[#allocation2] sm:$0xff]
        %v296 = vld [vmem:[#allocation2 + $0x8] sm:$0xff]
        %v297 = vld [vmem:[%s3] sm:$0xf]
        %v299 = vlaneseq
        %v300 = vshrl.u32 %v299, 7
        %v301 = vsub.s32 0, %v300
        %v302 = vrot.slane %v297, %v301
        %v303 = vlaneseq
        %v304 = vshrl.u32 %v303, 7
        %v305 = vsub.s32 1, %v304
        %v306 = vrot.slane %v297, %v305
        %v307 = vlaneseq
        %v308 = vshrl.u32 %v307, 7
        %v309 = vsub.s32 2, %v308
        %v310 = vrot.slane %v297, %v309
        %v311 = vlaneseq
        %v312 = vshrl.u32 %v311, 7
        %v313 = vsub.s32 3, %v312
        %v314 = vrot.slane %v297, %v313
        %v321 = vunpack.c.l.b16 %v295
        %v322 = vunpack.c.h.b16 %v295
        %v323 = vunpack.c.l.b16 %v296
        %v324 = vunpack.c.h.b16 %v296
        %v325 = vpack.c.b16 %v321, %v321
        %v326 = vpack.c.b16 %v322, %v322
        %v327 = vpack.c.b16 %v323, %v323
        %v328 = vpack.c.b16 %v324, %v324
        %vm329 = vcmask 64512
        %v331 = vsel %vm329, %v294, 0
        %vm333 = vcmask 1043456
        %v335 = vsel %vm333, %v325, 0
        %v338 = vsel %vm333, %v326, 0
        %v341 = vsel %vm333, %v327, 0
        %v344 = vsel %vm333, %v328, 0
        %346 = vmatprep.subr.bf16.mxu0 %v338
        %347 = vmatpush1.bf16.msra.mxu0 %v335
        %348 = vmatprep.subr.bf16.mxu0 0
        %349 = vmatpush1.bf16.msra.mxu0 0
        %350 = vmatprep.subr.bf16.mxu0 0
        %351 = vmatpush1.bf16.msra.mxu0 0
        %352 = vmatprep.subr.bf16.mxu0 0
        %353 = vmatpush1.bf16.msra.mxu0 0
        %354 = vmatprep.subr.bf16.mxu0 0
        %355 = vmatpush1.bf16.msra.mxu0 0
        %356 = vmatprep.subr.bf16.mxu0 0
        %357 = vmatpush1.bf16.msra.mxu0 0
        %358 = vmatprep.subr.bf16.mxu0 0
        %359 = vmatpush1.bf16.msra.mxu0 0
        %360 = vmatprep.subr.bf16.mxu0 0
        %361 = vmatpush1.bf16.msra.mxu0 0
        %362 = vmatprep.subr.bf16.mxu0 0
        %363 = vmatpush1.bf16.msra.mxu0 0
        %364 = vmatprep.subr.bf16.mxu0 0
        %365 = vmatpush1.bf16.msra.mxu0 0
        %366 = vmatprep.subr.bf16.mxu0 0
        %367 = vmatpush1.bf16.msra.mxu0 0
        %368 = vmatprep.subr.bf16.mxu0 0
        %369 = vmatpush1.bf16.msra.mxu0 0
        %370 = vmatprep.subr.bf16.mxu0 0
        %371 = vmatpush1.bf16.msra.mxu0 0
        %372 = vmatprep.subr.bf16.mxu0 0
        %373 = vmatpush1.bf16.msra.mxu0 0
        %374 = vmatprep.subr.bf16.mxu0 0
        %375 = vmatpush1.bf16.msra.mxu0 0
        %376 = vmatprep.subr.bf16.mxu0 0
        %377 = vmatpush1.bf16.msra.mxu0 0
        %378 = vmatprep.mubr.bf16.mxu0 0
        %379 = vmatmul.mubr.bf16.gmra.mrb[0].mxu0 %v331
        %v380 = vpop.f32.mrb[0].mxu0
        %v381 = vadd.f32 %v302, %v380
        %v382 = vpop.f32.mrb[0].mxu0
        %v383 = vadd.f32 %v306, %v382
        %v384 = vpop.f32.mrb[0].mxu0
        %v385 = vpop.f32.mrb[0].mxu0
        %386 = vdwg.mxu0
        %387 = vmatprep.subr.bf16.mxu0 %v344
        %388 = vmatpush1.bf16.msra.mxu0 %v341
        %389 = vmatprep.subr.bf16.mxu0 0
        %390 = vmatpush1.bf16.msra.mxu0 0
        %391 = vmatprep.subr.bf16.mxu0 0
        %392 = vmatpush1.bf16.msra.mxu0 0
        %393 = vmatprep.subr.bf16.mxu0 0
        %394 = vmatpush1.bf16.msra.mxu0 0
        %395 = vmatprep.subr.bf16.mxu0 0
        %396 = vmatpush1.bf16.msra.mxu0 0
        %397 = vmatprep.subr.bf16.mxu0 0
        %398 = vmatpush1.bf16.msra.mxu0 0
        %399 = vmatprep.subr.bf16.mxu0 0
        %400 = vmatpush1.bf16.msra.mxu0 0
        %401 = vmatprep.subr.bf16.mxu0 0
        %402 = vmatpush1.bf16.msra.mxu0 0
        %403 = vmatprep.subr.bf16.mxu0 0
        %404 = vmatpush1.bf16.msra.mxu0 0
        %405 = vmatprep.subr.bf16.mxu0 0
        %406 = vmatpush1.bf16.msra.mxu0 0
        %407 = vmatprep.subr.bf16.mxu0 0
        %408 = vmatpush1.bf16.msra.mxu0 0
        %409 = vmatprep.subr.bf16.mxu0 0
        %410 = vmatpush1.bf16.msra.mxu0 0
        %411 = vmatprep.subr.bf16.mxu0 0
        %412 = vmatpush1.bf16.msra.mxu0 0
        %413 = vmatprep.subr.bf16.mxu0 0
        %414 = vmatpush1.bf16.msra.mxu0 0
        %415 = vmatprep.subr.bf16.mxu0 0
        %416 = vmatpush1.bf16.msra.mxu0 0
        %417 = vmatprep.subr.bf16.mxu0 0
        %418 = vmatpush1.bf16.msra.mxu0 0
        %419 = vmatprep.mubr.bf16.mxu0 0
        %420 = vmatmul.mubr.bf16.gmra.mrb[0].mxu0 %v331
        %v421 = vpop.f32.mrb[0].mxu0
        %v422 = vadd.f32 %v310, %v421
        %v423 = vpop.f32.mrb[0].mxu0
        %v424 = vadd.f32 %v314, %v423
        %v425 = vpop.f32.mrb[0].mxu0
        %v426 = vpop.f32.mrb[0].mxu0
        %427 = vdwg.mxu0
        %v428 = vxor.u32 %v381, 2147483648
        %v429 = vxor.u32 %v383, 2147483648
        %v430 = vxor.u32 %v422, 2147483648
        %v431 = vxor.u32 %v424, 2147483648
        %v432 = vmul.f32 %v428, 1.442695
        %v433 = vpow.pop %v432
        %v434 = vmul.f32 %v429, 1.442695
        %v435 = vpow.pop %v434
        %v436 = vmul.f32 %v430, 1.442695
        %v437 = vpow.pop %v436
        %v438 = vmul.f32 %v431, 1.442695
        %v439 = vpow.pop %v438
        %v440 = vadd.f32 %v433, 1.0
        %v441 = vadd.f32 %v435, 1.0
        %v442 = vadd.f32 %v437, 1.0
        %v443 = vadd.f32 %v439, 1.0
        %v444 = vrcp.pop %v440
        %v445 = vmul.f32 1.0, %v444
        %v446 = vrcp.pop %v441
        %v447 = vmul.f32 1.0, %v446
        %v448 = vrcp.pop %v442
        %v449 = vmul.f32 1.0, %v448
        %v450 = vrcp.pop %v443
        %v451 = vmul.f32 1.0, %v450
        %v452 = vmul.f32 %v381, %v445
        %v453 = vmul.f32 %v383, %v447
        %v454 = vmul.f32 %v422, %v449
        %v455 = vmul.f32 %v424, %v451
        %v456 = vpack.c.bf16 %v452, %v452
        %v457 = vpack.c.bf16 %v453, %v453
        %v458 = vpack.c.bf16 %v454, %v454
        %v459 = vpack.c.bf16 %v455, %v455
        %v460 = vld [vmem:[#allocation5] sm:$0xff]
        %v461 = vld [vmem:[#allocation5 + $0x8] sm:$0xff]
        %v462 = vld [vmem:[#allocation5 + $0x10] sm:$0xff]
        %v463 = vld [vmem:[#allocation5 + $0x18] sm:$0xff]
        %v464 = vld [vmem:[#allocation5 + $0x20] sm:$0xff]
        %v465 = vld [vmem:[#allocation5 + $0x28] sm:$0xff]
        %v466 = vld [vmem:[#allocation5 + $0x30] sm:$0xff]
        %v467 = vld [vmem:[#allocation5 + $0x38] sm:$0xff]
        %v468 = vld [vmem:[#allocation5 + $0x40] sm:$0xff]
        %v469 = vld [vmem:[#allocation5 + $0x48] sm:$0xff]
        %v470 = vld [vmem:[#allocation5 + $0x50] sm:$0xff]
        %v471 = vld [vmem:[#allocation5 + $0x58] sm:$0xff]
        %v472 = vld [vmem:[#allocation5 + $0x60] sm:$0xff]
        %v473 = vld [vmem:[#allocation5 + $0x68] sm:$0xff]
        %v474 = vld [vmem:[#allocation5 + $0x70] sm:$0xff]
        %v475 = vld [vmem:[#allocation5 + $0x78] sm:$0xff]
        %v476 = vld [vmem:[#allocation5 + $0x80] sm:$0xff]
        %v477 = vld [vmem:[#allocation5 + $0x88] sm:$0xff]
        %v478 = vld [vmem:[#allocation5 + $0x90] sm:$0xff]
        %v479 = vld [vmem:[#allocation5 + $0x98] sm:$0xff]
        %v480 = vld [vmem:[#allocation5 + $0xa0] sm:$0xff]
        %v481 = vld [vmem:[#allocation5 + $0xa8] sm:$0xff]
        %v482 = vld [vmem:[#allocation5 + $0xb0] sm:$0xff]
        %v483 = vld [vmem:[#allocation5 + $0xb8] sm:$0xff]
        %v484 = vld [vmem:[#allocation5 + $0xc0] sm:$0xff]
        %v485 = vld [vmem:[#allocation5 + $0xc8] sm:$0xff]
        %v486 = vld [vmem:[#allocation5 + $0xd0] sm:$0xff]
        %v487 = vld [vmem:[#allocation5 + $0xd8] sm:$0xff]
        %v488 = vld [vmem:[#allocation5 + $0xe0] sm:$0xff]
        %v489 = vld [vmem:[#allocation5 + $0xe8] sm:$0xff]
        %v490 = vld [vmem:[#allocation5 + $0xf0] sm:$0xff]
        %v491 = vld [vmem:[#allocation5 + $0xf8] sm:$0xff]
        %v492 = vld [vmem:[#allocation5 + $0x100] sm:$0xff]
        %v493 = vld [vmem:[#allocation5 + $0x108] sm:$0xff]
        %v494 = vld [vmem:[#allocation5 + $0x110] sm:$0xff]
        %v495 = vld [vmem:[#allocation5 + $0x118] sm:$0xff]
        %v496 = vld [vmem:[#allocation5 + $0x120] sm:$0xff]
        %v497 = vld [vmem:[#allocation5 + $0x128] sm:$0xff]
        %v498 = vld [vmem:[#allocation5 + $0x130] sm:$0xff]
        %v499 = vld [vmem:[#allocation5 + $0x138] sm:$0xff]
        %v500 = vld [vmem:[#allocation5 + $0x140] sm:$0xff]
        %v501 = vld [vmem:[#allocation5 + $0x148] sm:$0xff]
        %v502 = vld [vmem:[#allocation5 + $0x150] sm:$0xff]
        %v503 = vld [vmem:[#allocation5 + $0x158] sm:$0xff]
        %v504 = vld [vmem:[#allocation5 + $0x160] sm:$0xff]
        %v505 = vld [vmem:[#allocation5 + $0x168] sm:$0xff]
        %v506 = vld [vmem:[#allocation5 + $0x170] sm:$0xff]
        %v507 = vld [vmem:[#allocation5 + $0x178] sm:$0xff]
        %v508 = vld [vmem:[#allocation5 + $0x180] sm:$0xff]
        %v509 = vld [vmem:[#allocation5 + $0x188] sm:$0xff]
        %v510 = vld [vmem:[#allocation5 + $0x190] sm:$0xff]
        %v511 = vld [vmem:[#allocation5 + $0x198] sm:$0xff]
        %v512 = vld [vmem:[#allocation5 + $0x1a0] sm:$0xff]
        %v513 = vld [vmem:[#allocation5 + $0x1a8] sm:$0xff]
        %v514 = vld [vmem:[#allocation5 + $0x1b0] sm:$0xff]
        %v515 = vld [vmem:[#allocation5 + $0x1b8] sm:$0xff]
        %v516 = vld [vmem:[#allocation5 + $0x1c0] sm:$0xff]
        %v517 = vld [vmem:[#allocation5 + $0x1c8] sm:$0xff]
        %v518 = vld [vmem:[#allocation5 + $0x1d0] sm:$0xff]
        %v519 = vld [vmem:[#allocation5 + $0x1d8] sm:$0xff]
        %v520 = vld [vmem:[#allocation5 + $0x1e0] sm:$0xff]
        %v521 = vld [vmem:[#allocation5 + $0x1e8] sm:$0xff]
        %v522 = vld [vmem:[#allocation5 + $0x1f0] sm:$0xff]
        %v523 = vld [vmem:[#allocation5 + $0x1f8] sm:$0xff]
        %v524 = vld [vmem:[%s5] sm:$0x3]
        %v526 = vlaneseq
        %v527 = vshrl.u32 %v526, 7
        %v528 = vsub.s32 0, %v527
        %v529 = vrot.slane %v524, %v528
        %v530 = vlaneseq
        %v531 = vshrl.u32 %v530, 7
        %v532 = vsub.s32 1, %v531
        %v533 = vrot.slane %v524, %v532
        %v600 = vunpack.c.l.b16 %v460
        %v601 = vunpack.c.h.b16 %v460
        %v602 = vunpack.c.l.b16 %v461
        %v603 = vunpack.c.h.b16 %v461
        %v604 = vunpack.c.l.b16 %v462
        %v605 = vunpack.c.h.b16 %v462
        %v606 = vunpack.c.l.b16 %v463
        %v607 = vunpack.c.h.b16 %v463
        %v608 = vunpack.c.l.b16 %v464
        %v609 = vunpack.c.h.b16 %v464
        %v610 = vunpack.c.l.b16 %v465
        %v611 = vunpack.c.h.b16 %v465
        %v612 = vunpack.c.l.b16 %v466
        %v613 = vunpack.c.h.b16 %v466
        %v614 = vunpack.c.l.b16 %v467
        %v615 = vunpack.c.h.b16 %v467
        %v616 = vunpack.c.l.b16 %v468
        %v617 = vunpack.c.h.b16 %v468
        %v618 = vunpack.c.l.b16 %v469
        %v619 = vunpack.c.h.b16 %v469
        %v620 = vunpack.c.l.b16 %v470
        %v621 = vunpack.c.h.b16 %v470
        %v622 = vunpack.c.l.b16 %v471
        %v623 = vunpack.c.h.b16 %v471
        %v624 = vunpack.c.l.b16 %v472
        %v625 = vunpack.c.h.b16 %v472
        %v626 = vunpack.c.l.b16 %v473
        %v627 = vunpack.c.h.b16 %v473
        %v628 = vunpack.c.l.b16 %v474
        %v629 = vunpack.c.h.b16 %v474
        %v630 = vunpack.c.l.b16 %v475
        %v631 = vunpack.c.h.b16 %v475
        %v632 = vunpack.c.l.b16 %v476
        %v633 = vunpack.c.h.b16 %v476
        %v634 = vunpack.c.l.b16 %v477
        %v635 = vunpack.c.h.b16 %v477
        %v636 = vunpack.c.l.b16 %v478
        %v637 = vunpack.c.h.b16 %v478
        %v638 = vunpack.c.l.b16 %v479
        %v639 = vunpack.c.h.b16 %v479
        %v640 = vunpack.c.l.b16 %v480
        %v641 = vunpack.c.h.b16 %v480
        %v642 = vunpack.c.l.b16 %v481
        %v643 = vunpack.c.h.b16 %v481
        %v644 = vunpack.c.l.b16 %v482
        %v645 = vunpack.c.h.b16 %v482
        %v646 = vunpack.c.l.b16 %v483
        %v647 = vunpack.c.h.b16 %v483
        %v648 = vunpack.c.l.b16 %v484
        %v649 = vunpack.c.h.b16 %v484
        %v650 = vunpack.c.l.b16 %v485
        %v651 = vunpack.c.h.b16 %v485
        %v652 = vunpack.c.l.b16 %v486
        %v653 = vunpack.c.h.b16 %v486
        %v654 = vunpack.c.l.b16 %v487
        %v655 = vunpack.c.h.b16 %v487
        %v656 = vunpack.c.l.b16 %v488
        %v657 = vunpack.c.h.b16 %v488
        %v658 = vunpack.c.l.b16 %v489
        %v659 = vunpack.c.h.b16 %v489
        %v660 = vunpack.c.l.b16 %v490
        %v661 = vunpack.c.h.b16 %v490
        %v662 = vunpack.c.l.b16 %v491
        %v663 = vunpack.c.h.b16 %v491
        %v664 = vunpack.c.l.b16 %v492
        %v665 = vunpack.c.h.b16 %v492
        %v666 = vunpack.c.l.b16 %v493
        %v667 = vunpack.c.h.b16 %v493
        %v668 = vunpack.c.l.b16 %v494
        %v669 = vunpack.c.h.b16 %v494
        %v670 = vunpack.c.l.b16 %v495
        %v671 = vunpack.c.h.b16 %v495
        %v672 = vunpack.c.l.b16 %v496
        %v673 = vunpack.c.h.b16 %v496
        %v674 = vunpack.c.l.b16 %v497
        %v675 = vunpack.c.h.b16 %v497
        %v676 = vunpack.c.l.b16 %v498
        %v677 = vunpack.c.h.b16 %v498
        %v678 = vunpack.c.l.b16 %v499
        %v679 = vunpack.c.h.b16 %v499
        %v680 = vunpack.c.l.b16 %v500
        %v681 = vunpack.c.h.b16 %v500
        %v682 = vunpack.c.l.b16 %v501
        %v683 = vunpack.c.h.b16 %v501
        %v684 = vunpack.c.l.b16 %v502
        %v685 = vunpack.c.h.b16 %v502
        %v686 = vunpack.c.l.b16 %v503
        %v687 = vunpack.c.h.b16 %v503
        %v688 = vunpack.c.l.b16 %v504
        %v689 = vunpack.c.h.b16 %v504
        %v690 = vunpack.c.l.b16 %v505
        %v691 = vunpack.c.h.b16 %v505
        %v692 = vunpack.c.l.b16 %v506
        %v693 = vunpack.c.h.b16 %v506
        %v694 = vunpack.c.l.b16 %v507
        %v695 = vunpack.c.h.b16 %v507
        %v696 = vunpack.c.l.b16 %v508
        %v697 = vunpack.c.h.b16 %v508
        %v698 = vunpack.c.l.b16 %v509
        %v699 = vunpack.c.h.b16 %v509
        %v700 = vunpack.c.l.b16 %v510
        %v701 = vunpack.c.h.b16 %v510
        %v702 = vunpack.c.l.b16 %v511
        %v703 = vunpack.c.h.b16 %v511
        %v704 = vunpack.c.l.b16 %v512
        %v705 = vunpack.c.h.b16 %v512
        %v706 = vunpack.c.l.b16 %v513
        %v707 = vunpack.c.h.b16 %v513
        %v708 = vunpack.c.l.b16 %v514
        %v709 = vunpack.c.h.b16 %v514
        %v710 = vunpack.c.l.b16 %v515
        %v711 = vunpack.c.h.b16 %v515
        %v712 = vunpack.c.l.b16 %v516
        %v713 = vunpack.c.h.b16 %v516
        %v714 = vunpack.c.l.b16 %v517
        %v715 = vunpack.c.h.b16 %v517
        %v716 = vunpack.c.l.b16 %v518
        %v717 = vunpack.c.h.b16 %v518
        %v718 = vunpack.c.l.b16 %v519
        %v719 = vunpack.c.h.b16 %v519
        %v720 = vunpack.c.l.b16 %v520
        %v721 = vunpack.c.h.b16 %v520
        %v722 = vunpack.c.l.b16 %v521
        %v723 = vunpack.c.h.b16 %v521
        %v724 = vunpack.c.l.b16 %v522
        %v725 = vunpack.c.h.b16 %v522
        %v726 = vunpack.c.l.b16 %v523
        %v727 = vunpack.c.h.b16 %v523
        %v728 = vpack.c.b16 %v602, %v600
        %v729 = vpack.c.b16 %v603, %v601
        %v730 = vpack.c.b16 %v606, %v604
        %v731 = vpack.c.b16 %v607, %v605
        %v732 = vpack.c.b16 %v610, %v608
        %v733 = vpack.c.b16 %v611, %v609
        %v734 = vpack.c.b16 %v614, %v612
        %v735 = vpack.c.b16 %v615, %v613
        %v736 = vpack.c.b16 %v618, %v616
        %v737 = vpack.c.b16 %v619, %v617
        %v738 = vpack.c.b16 %v622, %v620
        %v739 = vpack.c.b16 %v623, %v621
        %v740 = vpack.c.b16 %v626, %v624
        %v741 = vpack.c.b16 %v627, %v625
        %v742 = vpack.c.b16 %v630, %v628
        %v743 = vpack.c.b16 %v631, %v629
        %v744 = vpack.c.b16 %v634, %v632
        %v745 = vpack.c.b16 %v635, %v633
        %v746 = vpack.c.b16 %v638, %v636
        %v747 = vpack.c.b16 %v639, %v637
        %v748 = vpack.c.b16 %v642, %v640
        %v749 = vpack.c.b16 %v643, %v641
        %v750 = vpack.c.b16 %v646, %v644
        %v751 = vpack.c.b16 %v647, %v645
        %v752 = vpack.c.b16 %v650, %v648
        %v753 = vpack.c.b16 %v651, %v649
        %v754 = vpack.c.b16 %v654, %v652
        %v755 = vpack.c.b16 %v655, %v653
        %v756 = vpack.c.b16 %v658, %v656
        %v757 = vpack.c.b16 %v659, %v657
        %v758 = vpack.c.b16 %v662, %v660
        %v759 = vpack.c.b16 %v663, %v661
        %v760 = vpack.c.b16 %v666, %v664
        %v761 = vpack.c.b16 %v667, %v665
        %v762 = vpack.c.b16 %v670, %v668
        %v763 = vpack.c.b16 %v671, %v669
        %v764 = vpack.c.b16 %v674, %v672
        %v765 = vpack.c.b16 %v675, %v673
        %v766 = vpack.c.b16 %v678, %v676
        %v767 = vpack.c.b16 %v679, %v677
        %v768 = vpack.c.b16 %v682, %v680
        %v769 = vpack.c.b16 %v683, %v681
        %v770 = vpack.c.b16 %v686, %v684
        %v771 = vpack.c.b16 %v687, %v685
        %v772 = vpack.c.b16 %v690, %v688
        %v773 = vpack.c.b16 %v691, %v689
        %v774 = vpack.c.b16 %v694, %v692
        %v775 = vpack.c.b16 %v695, %v693
        %v776 = vpack.c.b16 %v698, %v696
        %v777 = vpack.c.b16 %v699, %v697
        %v778 = vpack.c.b16 %v702, %v700
        %v779 = vpack.c.b16 %v703, %v701
        %v780 = vpack.c.b16 %v706, %v704
        %v781 = vpack.c.b16 %v707, %v705
        %v782 = vpack.c.b16 %v710, %v708
        %v783 = vpack.c.b16 %v711, %v709
        %v784 = vpack.c.b16 %v714, %v712
        %v785 = vpack.c.b16 %v715, %v713
        %v786 = vpack.c.b16 %v718, %v716
        %v787 = vpack.c.b16 %v719, %v717
        %v788 = vpack.c.b16 %v722, %v720
        %v789 = vpack.c.b16 %v723, %v721
        %v790 = vpack.c.b16 %v726, %v724
        %v791 = vpack.c.b16 %v727, %v725
        %856 = vmatprep.subr.bf16.mxu0 %v729
        %857 = vmatpush1.bf16.msra.mxu0 %v728
        %858 = vmatprep.subr.bf16.mxu0 %v731
        %859 = vmatpush1.bf16.msra.mxu0 %v730
        %860 = vmatprep.subr.bf16.mxu0 %v733
        %861 = vmatpush1.bf16.msra.mxu0 %v732
        %862 = vmatprep.subr.bf16.mxu0 %v735
        %863 = vmatpush1.bf16.msra.mxu0 %v734
        %864 = vmatprep.subr.bf16.mxu0 %v737
        %865 = vmatpush1.bf16.msra.mxu0 %v736
        %866 = vmatprep.subr.bf16.mxu0 %v739
        %867 = vmatpush1.bf16.msra.mxu0 %v738
        %868 = vmatprep.subr.bf16.mxu0 %v741
        %869 = vmatpush1.bf16.msra.mxu0 %v740
        %870 = vmatprep.subr.bf16.mxu0 %v743
        %871 = vmatpush1.bf16.msra.mxu0 %v742
        %872 = vmatprep.subr.bf16.mxu0 %v745
        %873 = vmatpush1.bf16.msra.mxu0 %v744
        %874 = vmatprep.subr.bf16.mxu0 %v747
        %875 = vmatpush1.bf16.msra.mxu0 %v746
        %876 = vmatprep.subr.bf16.mxu0 %v749
        %877 = vmatpush1.bf16.msra.mxu0 %v748
        %878 = vmatprep.subr.bf16.mxu0 %v751
        %879 = vmatpush1.bf16.msra.mxu0 %v750
        %880 = vmatprep.subr.bf16.mxu0 %v753
        %881 = vmatpush1.bf16.msra.mxu0 %v752
        %882 = vmatprep.subr.bf16.mxu0 %v755
        %883 = vmatpush1.bf16.msra.mxu0 %v754
        %884 = vmatprep.subr.bf16.mxu0 %v757
        %885 = vmatpush1.bf16.msra.mxu0 %v756
        %886 = vmatprep.subr.bf16.mxu0 %v759
        %887 = vmatpush1.bf16.msra.mxu0 %v758
        %888 = vmatprep.mubr.bf16.mxu0 %v457
        %889 = vmatmul.mubr.bf16.gmra.mrb[0].mxu0 %v456
        %v890 = vpop.f32.mrb[0].mxu0
        %v891 = vadd.f32 %v529, %v890
        %v892 = vpop.f32.mrb[0].mxu0
        %v893 = vadd.f32 %v533, %v892
        %v894 = vpop.f32.mrb[0].mxu0
        %v895 = vpop.f32.mrb[0].mxu0
        %896 = vdwg.mxu0
        %897 = vmatprep.subr.bf16.mxu0 %v761
        %898 = vmatpush1.bf16.msra.mxu0 %v760
        %899 = vmatprep.subr.bf16.mxu0 %v763
        %900 = vmatpush1.bf16.msra.mxu0 %v762
        %901 = vmatprep.subr.bf16.mxu0 %v765
        %902 = vmatpush1.bf16.msra.mxu0 %v764
        %903 = vmatprep.subr.bf16.mxu0 %v767
        %904 = vmatpush1.bf16.msra.mxu0 %v766
        %905 = vmatprep.subr.bf16.mxu0 %v769
        %906 = vmatpush1.bf16.msra.mxu0 %v768
        %907 = vmatprep.subr.bf16.mxu0 %v771
        %908 = vmatpush1.bf16.msra.mxu0 %v770
        %909 = vmatprep.subr.bf16.mxu0 %v773
        %910 = vmatpush1.bf16.msra.mxu0 %v772
        %911 = vmatprep.subr.bf16.mxu0 %v775
        %912 = vmatpush1.bf16.msra.mxu0 %v774
        %913 = vmatprep.subr.bf16.mxu0 %v777
        %914 = vmatpush1.bf16.msra.mxu0 %v776
        %915 = vmatprep.subr.bf16.mxu0 %v779
        %916 = vmatpush1.bf16.msra.mxu0 %v778
        %917 = vmatprep.subr.bf16.mxu0 %v781
        %918 = vmatpush1.bf16.msra.mxu0 %v780
        %919 = vmatprep.subr.bf16.mxu0 %v783
        %920 = vmatpush1.bf16.msra.mxu0 %v782
        %921 = vmatprep.subr.bf16.mxu0 %v785
        %922 = vmatpush1.bf16.msra.mxu0 %v784
        %923 = vmatprep.subr.bf16.mxu0 %v787
        %924 = vmatpush1.bf16.msra.mxu0 %v786
        %925 = vmatprep.subr.bf16.mxu0 %v789
        %926 = vmatpush1.bf16.msra.mxu0 %v788
        %927 = vmatprep.subr.bf16.mxu0 %v791
        %928 = vmatpush1.bf16.msra.mxu0 %v790
        %929 = vmatprep.mubr.bf16.mxu0 %v459
        %930 = vmatmul.mubr.bf16.gmra.mrb[0].mxu0 %v458
        %v931 = vpop.f32.mrb[0].mxu0
        %v932 = vadd.f32 %v891, %v931
        %v933 = vpop.f32.mrb[0].mxu0
        %v934 = vadd.f32 %v893, %v933
        %v935 = vpop.f32.mrb[0].mxu0
        %v936 = vpop.f32.mrb[0].mxu0
        %937 = vdwg.mxu0
        %v938 = vld [vmem:[%s291] sm:$0xff]
        %v939 = vmul.f32 %v938, %v932
        %v940 = vadd.f32 %v939, %v934
        %941 = vst [vmem:[%s283] sm:$0xff] %v940
        %s942 = sand.u32 %s166, 1
        %s943 = scalar_lea.sflag [#allocation4], %s942
        %s944 = sand.u32 %s166, 1
        %s945 = smul.addr %s944, 8
        %s946 = scalar_lea.vmem [#allocation7], %s945
        // Predicated region
        $region53: #{tpu_custom_call.1} parent=43 // pred_check
          %p947 = pneg %p176
        $region54: #{tpu_custom_call.1} parent=43 // pred_check_branch
          %949 = sbr.rel (%p947) target = $region56
        $region55: #{tpu_custom_call.1} parent=43 // pred_region
          %s951 = ssub.s32 128, 128
          %952 = vsyncadd %s943, %s951
          %s953 = smul.addr %s22, 128
          %s954 = scalar_lea.hbm %s6, %s953
          %s956 = sshll.u32 %s946, 4
          %s957 = int_to_ptr.vmem [resolvable:$true] %s956
          %959 = dma.vmem_to_hbm [thread:$0]  %s957, 128, %s954, %s943
        $region56: #{tpu_custom_call.1} parent=43 // pred_fallthru
          _
      $region44: #{tpu_custom_call.1} parent=5 // pred_fallthru
        _
      %p960 = scmp.le.s32.totalorder 2, %s17
      // Predicated region
      $region57: #{tpu_custom_call.1} parent=5 // pred_check
        %p961 = pneg %p960
      $region58: #{tpu_custom_call.1} parent=5 // pred_check_branch
        %963 = sbr.rel (%p961) target = $region60
      $region59: #{tpu_custom_call.1} parent=5 // pred_region
        %s964 = ssub.s32 %s17, 2
        // Predicated region
        $region61: #{tpu_custom_call.1} parent=59 // pred_check
          %p965 = pneg %p182
        $region62: #{tpu_custom_call.1} parent=59 // pred_check_branch
          %967 = sbr.rel (%p965) target = $region64
        $region63: #{tpu_custom_call.1} parent=59 // pred_region
          %s968 = sand.u32 %s167, 1
          %s969 = scalar_lea.sflag [#allocation4], %s968
          %s970 = sand.u32 %s167, 1
          %s971 = smul.addr %s970, 8
          %s972 = scalar_lea.vmem [#allocation7], %s971
          %973 = dma.done %s969, 128
        $region64: #{tpu_custom_call.1} parent=59 // pred_fallthru
          _
      $region60: #{tpu_custom_call.1} parent=5 // pred_fallthru
        _
    $region6: #{tpu_custom_call.1} parent=1 // loop_footer
      %s21 = sadd.s32 1, %s17
    $region7: #{tpu_custom_call.1} parent=1 // loop_footer_branch
      %16 = sbr.rel target = $region3
    $region8: #{tpu_custom_call.1} parent=1 // loop_exit
      _
    %974 = vsyncpa [#allocation3], 1
    %s975 = scalar_lea.sflag [#allocation3], 1
    %976 = vsyncpa %s975, 1
    %977 = vsyncpa [#allocation6], 1
    %978 = vsyncpa [#allocation4], 1
    %s979 = scalar_lea.sflag [#allocation4], 1
    %980 = vsyncpa %s979, 1

</llo_original>
